<compile_context>
chip_gen: v7x
topology: tpu7x:2x2x1
jax: 0.10.0
libtpu: 0.0.40
codegen_flags: <defaults>
</compile_context>

<pallas_src>
import jax
import jax.numpy as jnp
from jax.experimental import pallas as pl
from jax.experimental.pallas import tpu as pltpu


# ---------------------------------------------------------------------------
# Kernels
# ---------------------------------------------------------------------------

def _unembed_whole_kernel(x_ref, o_ref):
    # x_ref: (B, HW, C) in VMEM; o_ref: (B, C, HW) in VMEM.
    o_ref[...] = jnp.swapaxes(x_ref[...], 1, 2)


def _unembed_tile_kernel(x_ref, o_ref):
    # Batch dim squeezed away: x_ref: (T_HW, C); o_ref: (C, T_HW).
    o_ref[...] = x_ref[...].T


# ---------------------------------------------------------------------------
# Helpers
# ---------------------------------------------------------------------------

def _vmem_capacity_bytes():
    try:
        return int(pltpu.get_tpu_info().vmem_capacity_bytes)
    except Exception:
        return 64 * 1024 * 1024  # conservative fallback (v7x per-TensorCore VMEM)


def _choose_t_hw(hw, c, itemsize, vmem_cap):
    """Largest multiple of 128 that divides hw and fits the per-tile budget."""
    # ~1/16 of VMEM per tile: ~8 MiB on v5e/v6e (128 MiB VMEM), ~4 MiB on v7x
    # (64 MiB), leaving room for 3 input + 2 output buffers of that size.
    max_tile_bytes = max(vmem_cap // 16, 128 * c * itemsize)
    cap = max(128, min(2048, max_tile_bytes // (c * itemsize)))
    best = None
    t = 128
    while t <= hw:
        if t <= cap and hw % t == 0:
            best = t
        t += 128
    if best is None:
        # TODO(synk): handle ragged HW (no multiple-of-128 divisor) with a
        # masked final tile instead of falling back to a full-HW block.
        return hw
    return best


def _make_in_spec(block_shape, index_map):
    # Request 3-deep input buffering; fall back gracefully if this jax
    # version's BlockSpec lacks `pipeline_mode` / `pl.Buffered`.
    try:
        return pl.BlockSpec(block_shape, index_map, pipeline_mode=pl.Buffered(3))
    except Exception:
        return pl.BlockSpec(block_shape, index_map)


# ---------------------------------------------------------------------------
# Public wrapper
# ---------------------------------------------------------------------------

def patch_unembed(x, x_size, nc, *, force_tiled=False):
    """Pallas implementation of PatchUnEmbed.forward.

    Args:
      x: jnp array of shape (B, HW, C) with C == nc and HW == H*W.
      x_size: (H, W) tuple of ints.
      nc: basefilter (number of channels).
      force_tiled: test hook to force the tiled code path.

    Returns:
      jnp array of shape (B, nc, H, W), same dtype as x.
    """
    B, HW, C = x.shape
    H, W = x_size
    assert C == nc, "channel dim must equal basefilter"
    assert HW == H * W, "sequence length must equal H*W"

    itemsize = jnp.dtype(x.dtype).itemsize
    total_bytes = B * HW * C * itemsize
    vmem_cap = _vmem_capacity_bytes()

    # Tiny problem: one whole-array invocation (no grid) — batch-fused,
    # zero per-step overhead.
    small = (2 * total_bytes) <= min(vmem_cap // 8, 4 * 1024 * 1024)

    if small and not force_tiled:
        out_chw = pl.pallas_call(
            _unembed_whole_kernel,
            out_shape=jax.ShapeDtypeStruct((B, C, HW), x.dtype),
        )(x)
    else:
        t_hw = _choose_t_hw(HW, C, itemsize, vmem_cap)
        tile_bytes = t_hw * C * itemsize
        # 3 input buffers + 2 output buffers of the tile + headroom; never go
        # below the 32 MiB default scope, never above physical VMEM.
        vmem_limit = int(min(vmem_cap,
                             max(5 * tile_bytes + (2 << 20), 32 << 20)))
        out_chw = pl.pallas_call(
            _unembed_tile_kernel,
            out_shape=jax.ShapeDtypeStruct((B, C, HW), x.dtype),
            grid=(B, HW // t_hw),
            in_specs=[_make_in_spec((None, t_hw, C), lambda b, j: (b, j, 0))],
            out_specs=pl.BlockSpec((None, C, t_hw), lambda b, j: (b, 0, j)),
            compiler_params=pltpu.CompilerParams(
                dimension_semantics=("parallel", "parallel"),
                vmem_limit_bytes=vmem_limit,
            ),
        )(x)

    # Free reshape (metadata only): (B, C, HW) -> (B, nc, H, W)
    return out_chw.reshape(B, nc, H, W)


# ---------------------------------------------------------------------------
# Self-test
# ---------------------------------------------------------------------------

if __name__ == "__main__":
    key = jax.random.PRNGKey(0)

    # --- Case 1: small shape from the module spec (whole-array fused path) ---
    B, nc, H, W = 2, 4, 16, 16
    HW = H * W
    x = jax.random.normal(key, (B, HW, nc), dtype=jnp.float32)

    out = patch_unembed(x, (H, W), nc)
    out = jax.block_until_ready(out)

    ref = jnp.transpose(x, (0, 2, 1)).reshape(B, nc, H, W)
    assert out.shape == (B, nc, H, W)
    assert jnp.array_equal(out, ref)

    # --- Case 2: exercise the tiled (squeezed-batch, HW-blocked) path ---
    B2, nc2, H2, W2 = 2, 8, 32, 32
    HW2 = H2 * W2
    x2 = jax.random.normal(jax.random.PRNGKey(0), (B2, HW2, nc2),
                           dtype=jnp.float32)

    out2 = patch_unembed(x2, (H2, W2), nc2, force_tiled=True)
    out2 = jax.block_until_ready(out2)

    ref2 = jnp.transpose(x2, (0, 2, 1)).reshape(B2, nc2, H2, W2)
    assert out2.shape == (B2, nc2, H2, W2)
    assert jnp.array_equal(out2, ref2)

    print("KERNEL_OK")
</pallas_src>

<mosaic_0001>
module attributes {stable_mosaic.version = 11 : i64} {
  func.func @_unembed_whole_kernel(%arg0: memref<2x256x4xf32, #tpu.memory_space<vmem>>, %arg1: memref<2x4x256xf32, #tpu.memory_space<vmem>>) attributes {dimension_semantics = [], scalar_prefetch = 0 : i64, scratch_operands = 0 : i64, tpu.core_type = #tpu.core_type<tc>} {
    %c0 = arith.constant 0 : index
    %c0_0 = arith.constant 0 : index
    %c0_1 = arith.constant 0 : index
    %0 = vector.load %arg0[%c0, %c0_0, %c0_1] : memref<2x256x4xf32, #tpu.memory_space<vmem>>, vector<2x256x4xf32>
    %1 = tpu.transpose %0, [0, 2, 1] : vector<2x256x4xf32> -> vector<2x4x256xf32>
    %c0_2 = arith.constant 0 : index
    %c0_3 = arith.constant 0 : index
    %c0_4 = arith.constant 0 : index
    %2 = vector.load %arg1[%c0_2, %c0_3, %c0_4] : memref<2x4x256xf32, #tpu.memory_space<vmem>>, vector<2x4x256xf32>
    tpu.vector_store %arg1[%c0_2, %c0_3, %c0_4], %1 {strides = array<i32>} : memref<2x4x256xf32, #tpu.memory_space<vmem>>, vector<2x4x256xf32>,
    return
  }
}

</mosaic_0001>

<llo_original>
// kernel: tpu_custom_call.1
$region0: #{tpu_custom_call.1}
  #allocation0 [shape = 'u32[]', space=smem, size = 0x4, offset = 0x4, fixed_abs, tag = 'smem constant byte address 0x4 - core index']
  #allocation1 [shape = 'u32[144,128]{1,0:T(1,128)}', space=vmem, size = 0x12000, scoped, tag = 'internal scratch']
  %s0 = inlined_call_operand.vmem [shape: f32[2,256,4], index: 0, kind: input, shape index: {}]
  %s1 = inlined_call_operand.hbm [shape: f32[2,4,256], index: 1, kind: output, shape index: {}]
  %s2 = sld [smem:[#allocation0]]
  $region14: #{tpu_custom_call.1} parent=0
    _
  %s4 = ssub.s32 1, %s2
  %s5 = scalar_select 0, %s4, %s2
  $region1: #{tpu_custom_call.1} parent=0
    #allocation2 [shape = 'u8[8192]{0}', space=vmem, size = 0x2000, scoped, tag = 'output window, operand 0, single buffered']
    #allocation3 [shape = 's32[1]{0}', space=sflag, size = 0x4, scoped, tag = 'scoped memory for tpu_custom_call.1']
    %6 = vsyncpa [#allocation3], 0
    // Predicated region
    $region2: #{tpu_custom_call.1} parent=1 // pred_check
      _
    $region3: #{tpu_custom_call.1} parent=1 // pred_check_branch
      %8 = sbr.rel (0) target = $region5
    $region4: #{tpu_custom_call.1} parent=1 // pred_region
      _
    $region5: #{tpu_custom_call.1} parent=1 // pred_fallthru
      _
    %v9 = vld [vmem:[%s0] sm:$0xff]
    %v10 = vld [vmem:[%s0 + $0x8] sm:$0xff]
    %v11 = vld [vmem:[%s0 + $0x10] sm:$0xff]
    %v12 = vld [vmem:[%s0 + $0x18] sm:$0xff]
    %v13 = vld [vmem:[%s0 + $0x20] sm:$0xff]
    %v14 = vld [vmem:[%s0 + $0x28] sm:$0xff]
    %v15 = vld [vmem:[%s0 + $0x30] sm:$0xff]
    %v16 = vld [vmem:[%s0 + $0x38] sm:$0xff]
    %v17 = vld [vmem:[%s0 + $0x40] sm:$0xff]
    %v18 = vld [vmem:[%s0 + $0x48] sm:$0xff]
    %v19 = vld [vmem:[%s0 + $0x50] sm:$0xff]
    %v20 = vld [vmem:[%s0 + $0x58] sm:$0xff]
    %v21 = vld [vmem:[%s0 + $0x60] sm:$0xff]
    %v22 = vld [vmem:[%s0 + $0x68] sm:$0xff]
    %v23 = vld [vmem:[%s0 + $0x70] sm:$0xff]
    %v24 = vld [vmem:[%s0 + $0x78] sm:$0xff]
    %v25 = vld [vmem:[%s0 + $0x80] sm:$0xff]
    %v26 = vld [vmem:[%s0 + $0x88] sm:$0xff]
    %v27 = vld [vmem:[%s0 + $0x90] sm:$0xff]
    %v28 = vld [vmem:[%s0 + $0x98] sm:$0xff]
    %v29 = vld [vmem:[%s0 + $0xa0] sm:$0xff]
    %v30 = vld [vmem:[%s0 + $0xa8] sm:$0xff]
    %v31 = vld [vmem:[%s0 + $0xb0] sm:$0xff]
    %v32 = vld [vmem:[%s0 + $0xb8] sm:$0xff]
    %v33 = vld [vmem:[%s0 + $0xc0] sm:$0xff]
    %v34 = vld [vmem:[%s0 + $0xc8] sm:$0xff]
    %v35 = vld [vmem:[%s0 + $0xd0] sm:$0xff]
    %v36 = vld [vmem:[%s0 + $0xd8] sm:$0xff]
    %v37 = vld [vmem:[%s0 + $0xe0] sm:$0xff]
    %v38 = vld [vmem:[%s0 + $0xe8] sm:$0xff]
    %v39 = vld [vmem:[%s0 + $0xf0] sm:$0xff]
    %v40 = vld [vmem:[%s0 + $0xf8] sm:$0xff]
    %v41 = vld [vmem:[%s0 + $0x100] sm:$0xff]
    %v42 = vld [vmem:[%s0 + $0x108] sm:$0xff]
    %v43 = vld [vmem:[%s0 + $0x110] sm:$0xff]
    %v44 = vld [vmem:[%s0 + $0x118] sm:$0xff]
    %v45 = vld [vmem:[%s0 + $0x120] sm:$0xff]
    %v46 = vld [vmem:[%s0 + $0x128] sm:$0xff]
    %v47 = vld [vmem:[%s0 + $0x130] sm:$0xff]
    %v48 = vld [vmem:[%s0 + $0x138] sm:$0xff]
    %v49 = vld [vmem:[%s0 + $0x140] sm:$0xff]
    %v50 = vld [vmem:[%s0 + $0x148] sm:$0xff]
    %v51 = vld [vmem:[%s0 + $0x150] sm:$0xff]
    %v52 = vld [vmem:[%s0 + $0x158] sm:$0xff]
    %v53 = vld [vmem:[%s0 + $0x160] sm:$0xff]
    %v54 = vld [vmem:[%s0 + $0x168] sm:$0xff]
    %v55 = vld [vmem:[%s0 + $0x170] sm:$0xff]
    %v56 = vld [vmem:[%s0 + $0x178] sm:$0xff]
    %v57 = vld [vmem:[%s0 + $0x180] sm:$0xff]
    %v58 = vld [vmem:[%s0 + $0x188] sm:$0xff]
    %v59 = vld [vmem:[%s0 + $0x190] sm:$0xff]
    %v60 = vld [vmem:[%s0 + $0x198] sm:$0xff]
    %v61 = vld [vmem:[%s0 + $0x1a0] sm:$0xff]
    %v62 = vld [vmem:[%s0 + $0x1a8] sm:$0xff]
    %v63 = vld [vmem:[%s0 + $0x1b0] sm:$0xff]
    %v64 = vld [vmem:[%s0 + $0x1b8] sm:$0xff]
    %v65 = vld [vmem:[%s0 + $0x1c0] sm:$0xff]
    %v66 = vld [vmem:[%s0 + $0x1c8] sm:$0xff]
    %v67 = vld [vmem:[%s0 + $0x1d0] sm:$0xff]
    %v68 = vld [vmem:[%s0 + $0x1d8] sm:$0xff]
    %v69 = vld [vmem:[%s0 + $0x1e0] sm:$0xff]
    %v70 = vld [vmem:[%s0 + $0x1e8] sm:$0xff]
    %v71 = vld [vmem:[%s0 + $0x1f0] sm:$0xff]
    %v72 = vld [vmem:[%s0 + $0x1f8] sm:$0xff]
    %73 = vxpose.xlu0.b32.start [1/16] %v9, 128
    %74 = vxpose.xlu0.b32.cont [2/16] %v10, 128
    %75 = vxpose.xlu0.b32.cont [3/16] %v11, 128
    %76 = vxpose.xlu0.b32.cont [4/16] %v12, 128
    %77 = vxpose.xlu0.b32.cont [5/16] %v13, 128
    %78 = vxpose.xlu0.b32.cont [6/16] %v14, 128
    %79 = vxpose.xlu0.b32.cont [7/16] %v15, 128
    %80 = vxpose.xlu0.b32.cont [8/16] %v16, 128
    %81 = vxpose.xlu0.b32.cont [9/16] %v17, 128
    %82 = vxpose.xlu0.b32.cont [10/16] %v18, 128
    %83 = vxpose.xlu0.b32.cont [11/16] %v19, 128
    %84 = vxpose.xlu0.b32.cont [12/16] %v20, 128
    %85 = vxpose.xlu0.b32.cont [13/16] %v21, 128
    %86 = vxpose.xlu0.b32.cont [14/16] %v22, 128
    %87 = vxpose.xlu0.b32.cont [15/16] %v23, 128
    %88 = vxpose.xlu0.b32.end [16/16] %v24, 128
    %v89 = vpop.trf.xlu0
    %v90 = vpop.trf.xlu0
    %v91 = vpop.trf.xlu0
    %v92 = vpop.trf.xlu0
    %v93 = vpop.trf.xlu0
    %v94 = vpop.trf.xlu0
    %v95 = vpop.trf.xlu0
    %v96 = vpop.trf.xlu0
    %v97 = vpop.trf.xlu0
    %v98 = vpop.trf.xlu0
    %v99 = vpop.trf.xlu0
    %v100 = vpop.trf.xlu0
    %v101 = vpop.trf.xlu0
    %v102 = vpop.trf.xlu0
    %v103 = vpop.trf.xlu0
    %v104 = vpop.trf.xlu0
    %105 = vxpose.xlu0.b32.start [1/16] %v25, 128
    %106 = vxpose.xlu0.b32.cont [2/16] %v26, 128
    %107 = vxpose.xlu0.b32.cont [3/16] %v27, 128
    %108 = vxpose.xlu0.b32.cont [4/16] %v28, 128
    %109 = vxpose.xlu0.b32.cont [5/16] %v29, 128
    %110 = vxpose.xlu0.b32.cont [6/16] %v30, 128
    %111 = vxpose.xlu0.b32.cont [7/16] %v31, 128
    %112 = vxpose.xlu0.b32.cont [8/16] %v32, 128
    %113 = vxpose.xlu0.b32.cont [9/16] %v33, 128
    %114 = vxpose.xlu0.b32.cont [10/16] %v34, 128
    %115 = vxpose.xlu0.b32.cont [11/16] %v35, 128
    %116 = vxpose.xlu0.b32.cont [12/16] %v36, 128
    %117 = vxpose.xlu0.b32.cont [13/16] %v37, 128
    %118 = vxpose.xlu0.b32.cont [14/16] %v38, 128
    %119 = vxpose.xlu0.b32.cont [15/16] %v39, 128
    %120 = vxpose.xlu0.b32.end [16/16] %v40, 128
    %v121 = vpop.trf.xlu0
    %v122 = vpop.trf.xlu0
    %v123 = vpop.trf.xlu0
    %v124 = vpop.trf.xlu0
    %v125 = vpop.trf.xlu0
    %v126 = vpop.trf.xlu0
    %v127 = vpop.trf.xlu0
    %v128 = vpop.trf.xlu0
    %v129 = vpop.trf.xlu0
    %v130 = vpop.trf.xlu0
    %v131 = vpop.trf.xlu0
    %v132 = vpop.trf.xlu0
    %v133 = vpop.trf.xlu0
    %v134 = vpop.trf.xlu0
    %v135 = vpop.trf.xlu0
    %v136 = vpop.trf.xlu0
    %137 = vxpose.xlu0.b32.start [1/16] %v41, 128
    %138 = vxpose.xlu0.b32.cont [2/16] %v42, 128
    %139 = vxpose.xlu0.b32.cont [3/16] %v43, 128
    %140 = vxpose.xlu0.b32.cont [4/16] %v44, 128
    %141 = vxpose.xlu0.b32.cont [5/16] %v45, 128
    %142 = vxpose.xlu0.b32.cont [6/16] %v46, 128
    %143 = vxpose.xlu0.b32.cont [7/16] %v47, 128
    %144 = vxpose.xlu0.b32.cont [8/16] %v48, 128
    %145 = vxpose.xlu0.b32.cont [9/16] %v49, 128
    %146 = vxpose.xlu0.b32.cont [10/16] %v50, 128
    %147 = vxpose.xlu0.b32.cont [11/16] %v51, 128
    %148 = vxpose.xlu0.b32.cont [12/16] %v52, 128
    %149 = vxpose.xlu0.b32.cont [13/16] %v53, 128
    %150 = vxpose.xlu0.b32.cont [14/16] %v54, 128
    %151 = vxpose.xlu0.b32.cont [15/16] %v55, 128
    %152 = vxpose.xlu0.b32.end [16/16] %v56, 128
    %v153 = vpop.trf.xlu0
    %v154 = vpop.trf.xlu0
    %v155 = vpop.trf.xlu0
    %v156 = vpop.trf.xlu0
    %v157 = vpop.trf.xlu0
    %v158 = vpop.trf.xlu0
    %v159 = vpop.trf.xlu0
    %v160 = vpop.trf.xlu0
    %v161 = vpop.trf.xlu0
    %v162 = vpop.trf.xlu0
    %v163 = vpop.trf.xlu0
    %v164 = vpop.trf.xlu0
    %v165 = vpop.trf.xlu0
    %v166 = vpop.trf.xlu0
    %v167 = vpop.trf.xlu0
    %v168 = vpop.trf.xlu0
    %169 = vxpose.xlu0.b32.start [1/16] %v57, 128
    %170 = vxpose.xlu0.b32.cont [2/16] %v58, 128
    %171 = vxpose.xlu0.b32.cont [3/16] %v59, 128
    %172 = vxpose.xlu0.b32.cont [4/16] %v60, 128
    %173 = vxpose.xlu0.b32.cont [5/16] %v61, 128
    %174 = vxpose.xlu0.b32.cont [6/16] %v62, 128
    %175 = vxpose.xlu0.b32.cont [7/16] %v63, 128
    %176 = vxpose.xlu0.b32.cont [8/16] %v64, 128
    %177 = vxpose.xlu0.b32.cont [9/16] %v65, 128
    %178 = vxpose.xlu0.b32.cont [10/16] %v66, 128
    %179 = vxpose.xlu0.b32.cont [11/16] %v67, 128
    %180 = vxpose.xlu0.b32.cont [12/16] %v68, 128
    %181 = vxpose.xlu0.b32.cont [13/16] %v69, 128
    %182 = vxpose.xlu0.b32.cont [14/16] %v70, 128
    %183 = vxpose.xlu0.b32.cont [15/16] %v71, 128
    %184 = vxpose.xlu0.b32.end [16/16] %v72, 128
    %v185 = vpop.trf.xlu0
    %v186 = vpop.trf.xlu0
    %v187 = vpop.trf.xlu0
    %v188 = vpop.trf.xlu0
    %v189 = vpop.trf.xlu0
    %v190 = vpop.trf.xlu0
    %v191 = vpop.trf.xlu0
    %v192 = vpop.trf.xlu0
    %v193 = vpop.trf.xlu0
    %v194 = vpop.trf.xlu0
    %v195 = vpop.trf.xlu0
    %v196 = vpop.trf.xlu0
    %v197 = vpop.trf.xlu0
    %v198 = vpop.trf.xlu0
    %v199 = vpop.trf.xlu0
    %v200 = vpop.trf.xlu0
    %v205 = vcombine.low %v89, %v121
    %v206 = vcombine.low %v153, %v185
    %209 = vst [vmem:[#allocation2] sm:$0xff] %v205
    %210 = vst [vmem:[#allocation2 + $0x8] sm:$0xff] %v206
    // Predicated region
    $region6: #{tpu_custom_call.1} parent=1 // pred_check
      _
    $region7: #{tpu_custom_call.1} parent=1 // pred_check_branch
      %212 = sbr.rel (0) target = $region9
    $region8: #{tpu_custom_call.1} parent=1 // pred_region
      %s214 = ssub.s32 256, 256
      %215 = vsyncadd [#allocation3], %s214
      %s216 = sshll.u32 [#allocation2], 4
      %s217 = int_to_ptr.vmem [resolvable:$true] %s216
      %222 = dma.vmem_to_hbm [thread:$0]  %s217, 256, %s1, [#allocation3], 128, 128, 8
    $region9: #{tpu_custom_call.1} parent=1 // pred_fallthru
      _
    // Predicated region
    $region10: #{tpu_custom_call.1} parent=1 // pred_check
      _
    $region11: #{tpu_custom_call.1} parent=1 // pred_check_branch
      %224 = sbr.rel (0) target = $region13
    $region12: #{tpu_custom_call.1} parent=1 // pred_region
      %225 = dma.done [#allocation3], 256
    $region13: #{tpu_custom_call.1} parent=1 // pred_fallthru
      _
    %226 = vsyncpa [#allocation3], 1

</llo_original>
